<compile_context>
chip_gen: v7x
topology: tpu7x:2x2x1
jax: 0.10.0
libtpu: 0.0.40
codegen_flags: <defaults>
</compile_context>

<pallas_src>
import jax
import jax.numpy as jnp
from jax.experimental import pallas as pl
from jax.experimental.pallas import tpu as pltpu


# ---------------------------------------------------------------------------
# Primary path: identity forward.
# ---------------------------------------------------------------------------
def _alias_identity_kernel(x_hbm_ref, o_hbm_ref, flag_ref):
    # Output aliases the input (input_output_aliases={0: 0}): the bytes already
    # live in the output HBM buffer, so the kernel moves nothing.  The SMEM
    # scalar write only keeps the kernel body non-empty.
    flag_ref[0] = jnp.int32(1)


def base_model_forward(x, donate=False):
    """Identity forward pass of the (abstract) BaseModel.

    Default: return `x` directly (free -- no kernel launch, no device copy).
    With `donate=True` (caller donates the input buffer, e.g. via
    `jax.jit(..., donate_argnums=...)`), emit a Pallas kernel whose output
    aliases the input buffer: no HBM reads/writes, no VMEM staging.
    """
    if not donate:
        return x
    return pl.pallas_call(
        _alias_identity_kernel,
        out_shape=jax.ShapeDtypeStruct(x.shape, x.dtype),
        in_specs=[pl.BlockSpec(memory_space=pl.ANY)],
        out_specs=pl.BlockSpec(memory_space=pl.ANY),
        scratch_shapes=[pltpu.SMEM((1,), jnp.int32)],
        input_output_aliases={0: 0},
    )(x)


# ---------------------------------------------------------------------------
# Secondary path: physical copy into a fresh buffer (single HBM->HBM DMA).
# ---------------------------------------------------------------------------
def _hbm_to_hbm_copy_kernel(x_hbm_ref, o_hbm_ref, sem):
    cp = pltpu.make_async_copy(x_hbm_ref, o_hbm_ref, sem)
    cp.start()
    cp.wait()


def base_model_forward_copy(x):
    """Identity forward that materializes a fresh output buffer.

    One direct HBM->HBM DMA on the whole (unreshaped) array: no VMEM staging,
    no padding/reshape/slice plumbing, no grid -- the copy runs at the HBM
    read+write roofline on v5e / v6e / v7x.
    """
    return pl.pallas_call(
        _hbm_to_hbm_copy_kernel,
        out_shape=jax.ShapeDtypeStruct(x.shape, x.dtype),
        in_specs=[pl.BlockSpec(memory_space=pl.ANY)],
        out_specs=pl.BlockSpec(memory_space=pl.ANY),
        scratch_shapes=[pltpu.SemaphoreType.DMA(())],
    )(x)


if __name__ == "__main__":
    key = jax.random.PRNGKey(0)
    # Small NCHW input consistent with an image-to-image BaseModel pipeline.
    x = jax.random.normal(key, (2, 4, 16, 16), dtype=jnp.float32)

    # Primary forward: identity (free).
    y = jax.block_until_ready(base_model_forward(x))
    assert y.shape == x.shape and y.dtype == x.dtype
    assert bool(jnp.allclose(y, x))

    # Primary forward, donated-buffer variant (aliased zero-traffic kernel).
    y_alias = jax.block_until_ready(base_model_forward(x, donate=True))
    assert y_alias.shape == x.shape and y_alias.dtype == x.dtype
    assert bool(jnp.allclose(y_alias, x))

    # Secondary forward: physical copy via single HBM->HBM DMA.
    y_copy = jax.block_until_ready(base_model_forward_copy(x))
    assert y_copy.shape == x.shape and y_copy.dtype == x.dtype
    assert bool(jnp.allclose(y_copy, x))

    print("KERNEL_OK")
</pallas_src>

<mosaic_0001>
module attributes {stable_mosaic.version = 11 : i64} {
  func.func @_alias_identity_kernel(%arg0: memref<2x4x16x16xf32, #tpu.memory_space<any>>, %arg1: memref<2x4x16x16xf32, #tpu.memory_space<any>>, %arg2: memref<1xi32, #tpu.memory_space<smem>>) attributes {dimension_semantics = [], scalar_prefetch = 0 : i64, scratch_operands = 1 : i64, tpu.core_type = #tpu.core_type<tc>} {
    %c1_i32 = arith.constant 1 : i32
    %c0 = arith.constant 0 : index
    %0 = memref.load %arg2[%c0] : memref<1xi32, #tpu.memory_space<smem>>
    memref.store %c1_i32, %arg2[%c0] : memref<1xi32, #tpu.memory_space<smem>>
    return
  }
}

</mosaic_0001>

<llo_original>
// kernel: tpu_custom_call.1
$region0: #{tpu_custom_call.1}
  #allocation0 [shape = 'u32[]', space=smem, size = 0x4, offset = 0x4, fixed_abs, tag = 'smem constant byte address 0x4 - core index']
  #allocation1 [shape = 'u32[144,128]{1,0:T(1,128)}', space=vmem, size = 0x12000, scoped, tag = 'internal scratch']
  #allocation2 [shape = 's32[1]{0:T(128)}', space=smem, size = 0x200, scoped, tag = 'scratch operand']
  %s0 = inlined_call_operand.hbm [shape: f32[2,4,16,16], index: 0, kind: input, shape index: {}, may-alias: {0,1}]
  %s1 = inlined_call_operand.hbm [shape: f32[2,4,16,16], index: 1, kind: output, shape index: {}, may-alias: {0,1}]
  %s2 = sld [smem:[#allocation0]]
  $region2: #{tpu_custom_call.1} parent=0
    _
  %s4 = ssub.s32 1, %s2
  %s5 = scalar_select 0, %s4, %s2
  %s6 = scalar_lea.smem [#allocation2], 0
  %7 = sst [smem:[%s6]] 1

</llo_original>
